<compile_context>
chip_gen: v6e
topology: v6e:2x2x1
jax: 0.10.0
libtpu: 0.0.40
codegen_flags: <defaults>
</compile_context>

<pallas_src>
import functools

import jax
import jax.numpy as jnp
from jax.experimental import pallas as pl
from jax.experimental.pallas import tpu as pltpu


def _round_up(x, m):
  return ((x + m - 1) // m) * m


def _atrous_sep_conv_kernel(x_ref, wc_ref, fb_ref, o_ref, pat_ref,
                            *, KH, KW, Cp, Wp, Ldep, dilation):
  """Fused depthwise(dilated) + pointwise conv, one image per grid step.

  x_ref  : (Cp, Lin)          flattened spatially-padded image (row stride Wp)
  wc_ref : (Cout, KH*KW*Cp)   combined weights: pw[co,c] * dw_tap[kh,kw,c]
  fb_ref : (Cout, 1)          fused bias = pw_w @ dw_b + pw_b
  o_ref  : (Cout, Ldep)       channel-major, lane-dense output (junk columns
                              beyond the valid width are trimmed in the wrapper)
  pat_ref: (KH*KW*Cp, Ldep)   im2col scratch (VMEM)
  """
  xv = x_ref[...].astype(jnp.float32)          # single load of the image

  # ---- im2col: KW lane shifts computed once, KH row windows are slices at ---
  # ---- offsets that are multiples of Wp (128-aligned when Wp % 128 == 0). ---
  span = (KH - 1) * dilation * Wp + Ldep
  shifted = [xv[:, kw * dilation: kw * dilation + span] for kw in range(KW)]
  for kh in range(KH):
    roff = kh * dilation * Wp                  # static row-window offset
    for kw in range(KW):
      t = kh * KW + kw
      pat_ref[t * Cp:(t + 1) * Cp, :] = shifted[kw][:, roff:roff + Ldep]

  # ---- single MXU contraction over taps*channels (K = KH*KW*Cp, not C) -----
  out = jnp.dot(wc_ref[...], pat_ref[...], preferred_element_type=jnp.float32)
  o_ref[...] = (out + fb_ref[...]).astype(o_ref.dtype)


def atrous_separable_conv2d(x_nchw, dw_weight, dw_bias, pw_weight, pw_bias,
                            *, stride=1, padding=0, dilation=1):
  """Forward pass of the PyTorch module. NCHW in, NCHW out.

  dw_weight: (C, 1, KH, KW)   depthwise Conv2d weight (groups=C)
  dw_bias  : (C,)
  pw_weight: (Cout, C, 1, 1)  pointwise Conv2d weight
  pw_bias  : (Cout,)
  """
  N, C, H, W = x_nchw.shape
  KH, KW = int(dw_weight.shape[2]), int(dw_weight.shape[3])
  Cout = int(pw_weight.shape[0])

  Hp = H + 2 * padding
  Wp = W + 2 * padding
  Hv = Hp - dilation * (KH - 1)                # stride-1 valid output extent
  Wv = Wp - dilation * (KW - 1)
  if Hv <= 0 or Wv <= 0:
    raise ValueError(
        f"Degenerate output: dilated kernel ({dilation}*(K-1)) exceeds padded "
        f"input extent (Hp={Hp}, Wp={Wp}, Hv={Hv}, Wv={Wv}).")
  Ho = (Hv - 1) // stride + 1
  Wo = (Wv - 1) // stride + 1

  # Lane-dense flat layout: pad the row stride to a multiple of 128 when the
  # row is non-trivially wide (aligned tap shifts + unmasked dense stores).
  Wp_pad = _round_up(Wp, 128) if Wp > 32 else Wp
  Cp = _round_up(C, 8)                         # sublane-aligned channel count
  Kpat = KH * KW * Cp                          # im2col contraction size

  Ldep = Hv * Wp_pad                           # flat output length per channel
  tail = (KW - 1) * dilation                   # keeps the last tap slice in-bounds
  Lin = Hp * Wp_pad + tail

  # ---- glue (channel-major throughout; only pad / free reshapes) -----------
  x_pad = jnp.pad(
      x_nchw,
      ((0, 0), (0, Cp - C), (padding, padding),
       (padding, padding + (Wp_pad - Wp))))
  x_flat = jnp.pad(x_pad.reshape(N, Cp, Hp * Wp_pad), ((0, 0), (0, 0), (0, tail)))

  f32 = jnp.float32
  # depthwise taps as (KH*KW, Cp), then fold into the pointwise weights:
  # W_comb[co, t*Cp + c] = pw[co, c] * dw_tap[t, c]   (zero for padded channels)
  taps = jnp.transpose(dw_weight[:, 0].astype(f32), (1, 2, 0)).reshape(KH * KW, C)
  taps = jnp.pad(taps, ((0, 0), (0, Cp - C)))
  pw_2d = pw_weight.reshape(Cout, C).astype(f32)
  pw_pad = jnp.pad(pw_2d, ((0, 0), (0, Cp - C)))
  w_comb = (pw_pad[:, None, :] * taps[None, :, :]).reshape(Cout, Kpat)
  # fold the depthwise bias through the (linear) pointwise conv; changes the
  # rounding order vs. the reference but is well within 1e-4 tolerances.
  fused_b = (pw_2d @ dw_bias.astype(f32) + pw_bias.astype(f32)).reshape(Cout, 1)

  kernel = functools.partial(_atrous_sep_conv_kernel,
                             KH=KH, KW=KW, Cp=Cp, Wp=Wp_pad, Ldep=Ldep,
                             dilation=dilation)

  in_isz = x_flat.dtype.itemsize
  out_isz = jnp.dtype(x_nchw.dtype).itemsize
  # VMEM budget from the actual block sizes (double-buffered in/out, im2col
  # scratch, lane-shifted copies), with headroom; clamped to [32, 96] MiB.
  vmem_est = (2 * Cp * Lin * in_isz
              + 2 * _round_up(Cout, 8) * Ldep * out_isz
              + Kpat * Ldep * 4
              + KW * Cp * Lin * 4
              + 2 * (_round_up(Cout, 8) * _round_up(Kpat, 128) + Cout * 128) * 4)
  vmem_limit = int(min(max(int(vmem_est * 1.5), 32 * 1024 * 1024),
                       96 * 1024 * 1024))

  flops = 2 * N * Cout * Kpat * Ldep
  bytes_accessed = (x_flat.size * in_isz
                    + N * Cout * Ldep * out_isz
                    + w_comb.size * 4 + fused_b.size * 4)

  out_flat = pl.pallas_call(
      kernel,
      out_shape=jax.ShapeDtypeStruct((N, Cout, Ldep), x_nchw.dtype),
      grid_spec=pltpu.PrefetchScalarGridSpec(
          num_scalar_prefetch=0,
          grid=(N,),
          in_specs=[
              pl.BlockSpec((None, Cp, Lin), lambda n: (n, 0, 0)),
              pl.BlockSpec((Cout, Kpat), lambda n: (0, 0)),
              pl.BlockSpec((Cout, 1), lambda n: (0, 0)),
          ],
          out_specs=pl.BlockSpec((None, Cout, Ldep), lambda n: (n, 0, 0)),
          scratch_shapes=[pltpu.VMEM((Kpat, Ldep), jnp.float32)],
      ),
      compiler_params=pltpu.CompilerParams(
          dimension_semantics=("parallel",),
          vmem_limit_bytes=vmem_limit),
      cost_estimate=pl.CostEstimate(flops=flops, transcendentals=0,
                                    bytes_accessed=bytes_accessed),
  )(x_flat, w_comb, fused_b)

  # glue: free contiguous reshape, then stride subsample / junk-column trim.
  y = out_flat.reshape(N, Cout, Hv, Wp_pad)
  if stride > 1:
    y = y[:, :, ::stride, ::stride]
  return y[:, :, :Ho, :Wo]


def _reference(x, dw_weight, dw_bias, pw_weight, pw_bias,
               *, stride, padding, dilation):
  """Pure-JAX reference using lax.conv_general_dilated (NCHW, PyTorch shapes)."""
  C = x.shape[1]
  y = jax.lax.conv_general_dilated(
      x, dw_weight, window_strides=(stride, stride),
      padding=[(padding, padding), (padding, padding)],
      rhs_dilation=(dilation, dilation),
      dimension_numbers=("NCHW", "OIHW", "NCHW"),
      feature_group_count=C)
  y = y + dw_bias[None, :, None, None]
  z = jax.lax.conv_general_dilated(
      y, pw_weight, (1, 1), [(0, 0), (0, 0)],
      dimension_numbers=("NCHW", "OIHW", "NCHW"))
  return z + pw_bias[None, :, None, None]


if __name__ == "__main__":
  # Module config (atrous separable conv)
  in_size, out_size = 4, 8
  kernel_size = 3

  key = jax.random.PRNGKey(0)
  kx, kdw, kdb, kpw, kpb = jax.random.split(key, 5)

  # Input (NCHW, like the PyTorch module)
  x = jax.random.normal(kx, (2, in_size, 16, 16), dtype=jnp.float32)

  # Deterministic kaiming-style init (gain sqrt(2), fan_in scaling), PyTorch shapes.
  fan_in_dw = kernel_size * kernel_size            # groups=in_size -> 1*K*K
  dw_w = jax.random.normal(kdw, (in_size, 1, kernel_size, kernel_size),
                           dtype=jnp.float32) * jnp.sqrt(2.0 / fan_in_dw)
  dw_b = jax.random.normal(kdb, (in_size,), dtype=jnp.float32) * 0.1
  fan_in_pw = in_size
  pw_w = jax.random.normal(kpw, (out_size, in_size, 1, 1),
                           dtype=jnp.float32) * jnp.sqrt(2.0 / fan_in_pw)
  pw_b = jax.random.normal(kpb, (out_size,), dtype=jnp.float32) * 0.1

  # --- main config: stride=1, padding=2, dilation=2 -------------------------
  cfg = dict(stride=1, padding=2, dilation=2)
  out = atrous_separable_conv2d(x, dw_w, dw_b, pw_w, pw_b, **cfg)
  out = jax.block_until_ready(out)
  ref = _reference(x, dw_w, dw_b, pw_w, pw_b, **cfg)
  assert out.shape == ref.shape, (out.shape, ref.shape)
  assert jnp.allclose(out, ref, atol=1e-4, rtol=1e-4), "mismatch (stride=1)"

  # --- strided config: stride=2, padding=1, dilation=1 (subsample in wrapper)
  cfg2 = dict(stride=2, padding=1, dilation=1)
  out2 = atrous_separable_conv2d(x, dw_w, dw_b, pw_w, pw_b, **cfg2)
  out2 = jax.block_until_ready(out2)
  ref2 = _reference(x, dw_w, dw_b, pw_w, pw_b, **cfg2)
  assert out2.shape == ref2.shape, (out2.shape, ref2.shape)
  assert jnp.allclose(out2, ref2, atol=1e-4, rtol=1e-4), "mismatch (stride=2)"

  print("KERNEL_OK")
</pallas_src>

<mosaic_0001>
module attributes {stable_mosaic.version = 11 : i64} {
  func.func @_atrous_sep_conv_kernel(%arg0: i32, %arg1: memref<1x8x404xf32, #tpu.memory_space<vmem>>, %arg2: memref<8x72xf32, #tpu.memory_space<vmem>>, %arg3: memref<8x1xf32, #tpu.memory_space<vmem>>, %arg4: memref<1x8x320xf32, #tpu.memory_space<vmem>>, %arg5: memref<72x320xf32, #tpu.memory_space<vmem>>) attributes {dimension_semantics = [#tpu.dimension_semantics<parallel>], iteration_bounds = array<i64: 2>, scalar_prefetch = 0 : i64, scratch_operands = 1 : i64, tpu.core_type = #tpu.core_type<tc>, window_params = [{transform_indices = @transform_0, window_bounds = array<i64: 1, 8, 404>}, {pipeline_mode = #tpu.pipeline_mode<synchronous>, transform_indices = @transform_1, window_bounds = array<i64: 8, 72>}, {pipeline_mode = #tpu.pipeline_mode<synchronous>, transform_indices = @transform_2, window_bounds = array<i64: 8, 1>}, {transform_indices = @transform_3, window_bounds = array<i64: 1, 8, 320>}]} {
    %c0 = arith.constant 0 : index
    %c0_0 = arith.constant 0 : index
    %c0_1 = arith.constant 0 : index
    %0 = vector.load %arg1[%c0, %c0_0, %c0_1] : memref<1x8x404xf32, #tpu.memory_space<vmem>>, vector<1x8x404xf32>
    %1 = vector.shape_cast %0 : vector<1x8x404xf32> to vector<8x404xf32>
    %2 = vector.extract_strided_slice %1 {offsets = [0, 0], sizes = [8, 400], strides = [1, 1]} : vector<8x404xf32> to vector<8x400xf32>
    %3 = vector.extract_strided_slice %1 {offsets = [0, 2], sizes = [8, 400], strides = [1, 1]} : vector<8x404xf32> to vector<8x400xf32>
    %4 = vector.extract_strided_slice %1 {offsets = [0, 4], sizes = [8, 400], strides = [1, 1]} : vector<8x404xf32> to vector<8x400xf32>
    %5 = vector.extract_strided_slice %2 {offsets = [0, 0], sizes = [8, 320], strides = [1, 1]} : vector<8x400xf32> to vector<8x320xf32>
    %c0_2 = arith.constant 0 : index
    %c0_3 = arith.constant 0 : index
    %6 = vector.load %arg5[%c0_2, %c0_3] : memref<72x320xf32, #tpu.memory_space<vmem>>, vector<8x320xf32>
    tpu.vector_store %arg5[%c0_2, %c0_3], %5 {strides = array<i32>} : memref<72x320xf32, #tpu.memory_space<vmem>>, vector<8x320xf32>,
    %7 = vector.extract_strided_slice %3 {offsets = [0, 0], sizes = [8, 320], strides = [1, 1]} : vector<8x400xf32> to vector<8x320xf32>
    %c8 = arith.constant 8 : index
    %c0_4 = arith.constant 0 : index
    %8 = vector.load %arg5[%c8, %c0_4] : memref<72x320xf32, #tpu.memory_space<vmem>>, vector<8x320xf32>
    tpu.vector_store %arg5[%c8, %c0_4], %7 {strides = array<i32>} : memref<72x320xf32, #tpu.memory_space<vmem>>, vector<8x320xf32>,
    %9 = vector.extract_strided_slice %4 {offsets = [0, 0], sizes = [8, 320], strides = [1, 1]} : vector<8x400xf32> to vector<8x320xf32>
    %c16 = arith.constant 16 : index
    %c0_5 = arith.constant 0 : index
    %10 = vector.load %arg5[%c16, %c0_5] : memref<72x320xf32, #tpu.memory_space<vmem>>, vector<8x320xf32>
    tpu.vector_store %arg5[%c16, %c0_5], %9 {strides = array<i32>} : memref<72x320xf32, #tpu.memory_space<vmem>>, vector<8x320xf32>,
    %11 = vector.extract_strided_slice %2 {offsets = [0, 40], sizes = [8, 320], strides = [1, 1]} : vector<8x400xf32> to vector<8x320xf32>
    %c24 = arith.constant 24 : index
    %c0_6 = arith.constant 0 : index
    %12 = vector.load %arg5[%c24, %c0_6] : memref<72x320xf32, #tpu.memory_space<vmem>>, vector<8x320xf32>
    tpu.vector_store %arg5[%c24, %c0_6], %11 {strides = array<i32>} : memref<72x320xf32, #tpu.memory_space<vmem>>, vector<8x320xf32>,
    %13 = vector.extract_strided_slice %3 {offsets = [0, 40], sizes = [8, 320], strides = [1, 1]} : vector<8x400xf32> to vector<8x320xf32>
    %c32 = arith.constant 32 : index
    %c0_7 = arith.constant 0 : index
    %14 = vector.load %arg5[%c32, %c0_7] : memref<72x320xf32, #tpu.memory_space<vmem>>, vector<8x320xf32>
    tpu.vector_store %arg5[%c32, %c0_7], %13 {strides = array<i32>} : memref<72x320xf32, #tpu.memory_space<vmem>>, vector<8x320xf32>,
    %15 = vector.extract_strided_slice %4 {offsets = [0, 40], sizes = [8, 320], strides = [1, 1]} : vector<8x400xf32> to vector<8x320xf32>
    %c40 = arith.constant 40 : index
    %c0_8 = arith.constant 0 : index
    %16 = vector.load %arg5[%c40, %c0_8] : memref<72x320xf32, #tpu.memory_space<vmem>>, vector<8x320xf32>
    tpu.vector_store %arg5[%c40, %c0_8], %15 {strides = array<i32>} : memref<72x320xf32, #tpu.memory_space<vmem>>, vector<8x320xf32>,
    %17 = vector.extract_strided_slice %2 {offsets = [0, 80], sizes = [8, 320], strides = [1, 1]} : vector<8x400xf32> to vector<8x320xf32>
    %c48 = arith.constant 48 : index
    %c0_9 = arith.constant 0 : index
    %18 = vector.load %arg5[%c48, %c0_9] : memref<72x320xf32, #tpu.memory_space<vmem>>, vector<8x320xf32>
    tpu.vector_store %arg5[%c48, %c0_9], %17 {strides = array<i32>} : memref<72x320xf32, #tpu.memory_space<vmem>>, vector<8x320xf32>,
    %19 = vector.extract_strided_slice %3 {offsets = [0, 80], sizes = [8, 320], strides = [1, 1]} : vector<8x400xf32> to vector<8x320xf32>
    %c56 = arith.constant 56 : index
    %c0_10 = arith.constant 0 : index
    %20 = vector.load %arg5[%c56, %c0_10] : memref<72x320xf32, #tpu.memory_space<vmem>>, vector<8x320xf32>
    tpu.vector_store %arg5[%c56, %c0_10], %19 {strides = array<i32>} : memref<72x320xf32, #tpu.memory_space<vmem>>, vector<8x320xf32>,
    %21 = vector.extract_strided_slice %4 {offsets = [0, 80], sizes = [8, 320], strides = [1, 1]} : vector<8x400xf32> to vector<8x320xf32>
    %c64 = arith.constant 64 : index
    %c0_11 = arith.constant 0 : index
    %22 = vector.load %arg5[%c64, %c0_11] : memref<72x320xf32, #tpu.memory_space<vmem>>, vector<8x320xf32>
    tpu.vector_store %arg5[%c64, %c0_11], %21 {strides = array<i32>} : memref<72x320xf32, #tpu.memory_space<vmem>>, vector<8x320xf32>,
    %c0_12 = arith.constant 0 : index
    %c0_13 = arith.constant 0 : index
    %23 = vector.load %arg2[%c0_12, %c0_13] : memref<8x72xf32, #tpu.memory_space<vmem>>, vector<8x72xf32>
    %c0_14 = arith.constant 0 : index
    %c0_15 = arith.constant 0 : index
    %24 = vector.load %arg5[%c0_14, %c0_15] : memref<72x320xf32, #tpu.memory_space<vmem>>, vector<72x320xf32>
    %cst = arith.constant dense<0.000000e+00> : vector<8x320xf32>
    %25 = tpu.matmul %23, %24, %cst {dimension_numbers = #tpu.dot_dimension_numbers<[1], [0], [0], [1], [0, 0, 1, 1], [], []>} : vector<8x72xf32>, vector<72x320xf32>, vector<8x320xf32> -> vector<8x320xf32>
    %c0_16 = arith.constant 0 : index
    %c0_17 = arith.constant 0 : index
    %26 = vector.load %arg3[%c0_16, %c0_17] : memref<8x1xf32, #tpu.memory_space<vmem>>, vector<8x1xf32>
    %27 = vector.broadcast %26 : vector<8x1xf32> to vector<8x320xf32>
    %28 = arith.addf %25, %27 : vector<8x320xf32>
    %c0_18 = arith.constant 0 : index
    %c0_19 = arith.constant 0 : index
    %c0_20 = arith.constant 0 : index
    %29 = vector.load %arg4[%c0_18, %c0_19, %c0_20] : memref<1x8x320xf32, #tpu.memory_space<vmem>>, vector<1x8x320xf32>
    %30 = vector.shape_cast %29 : vector<1x8x320xf32> to vector<8x320xf32>
    %31 = vector.shape_cast %28 : vector<8x320xf32> to vector<1x8x320xf32>
    tpu.vector_store %arg4[%c0_18, %c0_19, %c0_20], %31 {strides = array<i32>} : memref<1x8x320xf32, #tpu.memory_space<vmem>>, vector<1x8x320xf32>,
    return
  }
  func.func @transform_0(%arg0: i32) -> (i32, i32, i32) {
    %c0_i32 = arith.constant 0 : i32
    %c0_i32_0 = arith.constant 0 : i32
    %c0_i32_1 = arith.constant 0 : i32
    return %arg0, %c0_i32, %c0_i32_0 : i32, i32, i32
  }
  func.func @transform_1(%arg0: i32) -> (i32, i32) {
    %c0_i32 = arith.constant 0 : i32
    %c0_i32_0 = arith.constant 0 : i32
    %c0_i32_1 = arith.constant 0 : i32
    return %c0_i32, %c0_i32_0 : i32, i32
  }
  func.func @transform_2(%arg0: i32) -> (i32, i32) {
    %c0_i32 = arith.constant 0 : i32
    %c0_i32_0 = arith.constant 0 : i32
    %c0_i32_1 = arith.constant 0 : i32
    return %c0_i32, %c0_i32_0 : i32, i32
  }
  func.func @transform_3(%arg0: i32) -> (i32, i32, i32) {
    %c0_i32 = arith.constant 0 : i32
    %c0_i32_0 = arith.constant 0 : i32
    %c0_i32_1 = arith.constant 0 : i32
    return %arg0, %c0_i32, %c0_i32_0 : i32, i32, i32
  }
}

</mosaic_0001>

<llo_original>
// kernel: tpu_custom_call.1
$region0: #{tpu_custom_call.1}
  #allocation0 [shape = 'u32[]', space=smem, size = 0x4, offset = 0x4, fixed_abs, tag = 'smem constant byte address 0x4 - core index']
  #allocation1 [shape = 'u32[144,128]{1,0:T(1,128)}', space=vmem, size = 0x12000, scoped, tag = 'internal scratch']
  #allocation2 [shape = 'f32[72,320]{1,0:T(8,128)}', space=vmem, size = 0x1b000, scoped, tag = 'scratch operand']
  %s0 = inlined_call_operand.hbm [shape: f32[2,8,404], index: 0, kind: input, shape index: {}]
  %s1 = inlined_call_operand.vmem [shape: f32[8,72], index: 1, kind: input, shape index: {}]
  %s2 = inlined_call_operand.vmem [shape: f32[8,1], index: 2, kind: input, shape index: {}]
  %s3 = inlined_call_operand.hbm [shape: f32[2,8,320], index: 3, kind: output, shape index: {}]
  %s4 = sld [smem:[#allocation0]]
  $region49: #{tpu_custom_call.1} parent=0
    _
  %s6 = ssub.s32 1, %s4
  %s7 = scalar_select 0, %s6, %s4
  $region1: #{tpu_custom_call.1} parent=0
    #allocation3 [shape = 'u8[32768]{0}', space=vmem, size = 0x8000, scoped, tag = 'input window, operand 0']
    #allocation4 [shape = 's32[2]{0}', space=sflag, size = 0x8, scoped, tag = 'scoped memory for tpu_custom_call.1']
    #allocation5 [shape = 's32[2]{0}', space=sflag, size = 0x8, scoped, tag = 'scoped memory for tpu_custom_call.1']
    #allocation6 [shape = 'u8[24576]{0}', space=vmem, size = 0x6000, scoped, tag = 'output window, operand 0']
    %8 = vsyncpa [#allocation4], 0
    %s9 = scalar_lea.sflag [#allocation4], 1
    %10 = vsyncpa %s9, 0
    %11 = vsyncpa [#allocation5], 0
    %s12 = scalar_lea.sflag [#allocation5], 1
    %13 = vsyncpa %s12, 0
    loop: start=0, step=1, limit=4
    $region2: #{tpu_custom_call.1} parent=1 // loop_pre_header
      _
    $region3: #{tpu_custom_call.1} parent=1 // loop_header
      %s15 = sphi 0, %s19
      %p16 = scmp.ge.s32.totalorder %s15, 4
      %s25 = sphi 0, %s27
      %s28 = sphi 0, %s25
      %s29 = sphi 0, %s28
      %s45 = sphi 0, %s29
      %s49 = sphi 0, %s49
      %s51 = sphi 0, %s49
      %s52 = sphi 0, %s51
      %s66 = sphi 0, %s52
      %s70 = sphi 0, %s70
      %s72 = sphi 0, %s70
      %s73 = sphi 0, %s72
      %s87 = sphi 0, %s73
      %s93 = sphi 0, %s95
      %s96 = sphi 0, %s93
      %s97 = sphi 0, %s96
      %s113 = sphi 0, %s97
    $region4: #{tpu_custom_call.1} parent=1 // loop_header_branch
      %18 = sbr.rel (%p16) target = $region8
    $region5: #{tpu_custom_call.1} parent=1 // loop_body
      %s20 = ssub.s32 %s15, 1
      %s21 = ssub.s32 %s15, 2
      %s22 = sadd.s32 %s15, 1
      %s23 = ssub.s32 %s15, %s22
      %p24 = scmp.eq.s32.totalorder %s23, 0
      %s26 = sadd.s32 %s25, 1
      %s27 = scalar_select %p24, %s25, %s26
      %p30 = pneg %p24
      %p31 = scmp.eq.s32.totalorder %s15, 1
      %p32 = por %p30, %p31
      %p33 = scmp.ne.s32.totalorder %s25, %s28
      %p34 = scmp.eq.s32.totalorder %s15, 0
      %p35 = por %p33, %p34
      %p36 = scmp.ne.s32.totalorder %s25, %s28
      %p37 = scmp.eq.s32.totalorder %s20, 1
      %p38 = por %p36, %p37
      %p39 = scmp.ne.s32.totalorder %s28, %s29
      %p40 = scmp.eq.s32.totalorder %s20, 0
      %p41 = por %p39, %p40
      %p42 = scmp.ne.s32.totalorder %s28, %s29
      %p43 = scmp.eq.s32.totalorder %s21, 1
      %p44 = por %p42, %p43
      %p46 = scmp.ne.s32.totalorder %s29, %s45
      %p47 = scmp.eq.s32.totalorder %s21, 0
      %p48 = por %p46, %p47
      %s50 = sadd.s32 %s49, 1
      %p53 = scmp.eq.s32.totalorder %s15, 1
      %p54 = scmp.ne.s32.totalorder %s49, %s51
      %p55 = scmp.eq.s32.totalorder %s15, 0
      %p56 = por %p54, %p55
      %p57 = scmp.ne.s32.totalorder %s49, %s51
      %p58 = scmp.eq.s32.totalorder %s20, 1
      %p59 = por %p57, %p58
      %p60 = scmp.ne.s32.totalorder %s51, %s52
      %p61 = scmp.eq.s32.totalorder %s20, 0
      %p62 = por %p60, %p61
      %p63 = scmp.ne.s32.totalorder %s51, %s52
      %p64 = scmp.eq.s32.totalorder %s21, 1
      %p65 = por %p63, %p64
      %p67 = scmp.ne.s32.totalorder %s52, %s66
      %p68 = scmp.eq.s32.totalorder %s21, 0
      %p69 = por %p67, %p68
      %s71 = sadd.s32 %s70, 1
      %p74 = scmp.eq.s32.totalorder %s15, 1
      %p75 = scmp.ne.s32.totalorder %s70, %s72
      %p76 = scmp.eq.s32.totalorder %s15, 0
      %p77 = por %p75, %p76
      %p78 = scmp.ne.s32.totalorder %s70, %s72
      %p79 = scmp.eq.s32.totalorder %s20, 1
      %p80 = por %p78, %p79
      %p81 = scmp.ne.s32.totalorder %s72, %s73
      %p82 = scmp.eq.s32.totalorder %s20, 0
      %p83 = por %p81, %p82
      %p84 = scmp.ne.s32.totalorder %s72, %s73
      %p85 = scmp.eq.s32.totalorder %s21, 1
      %p86 = por %p84, %p85
      %p88 = scmp.ne.s32.totalorder %s73, %s87
      %p89 = scmp.eq.s32.totalorder %s21, 0
      %p90 = por %p88, %p89
      %s91 = ssub.s32 %s15, %s22
      %p92 = scmp.eq.s32.totalorder %s91, 0
      %s94 = sadd.s32 %s93, 1
      %s95 = scalar_select %p92, %s93, %s94
      %p98 = pneg %p92
      %p99 = scmp.eq.s32.totalorder %s15, 1
      %p100 = por %p98, %p99
      %p101 = scmp.ne.s32.totalorder %s93, %s96
      %p102 = scmp.eq.s32.totalorder %s15, 0
      %p103 = por %p101, %p102
      %p104 = scmp.ne.s32.totalorder %s93, %s96
      %p105 = scmp.eq.s32.totalorder %s20, 1
      %p106 = por %p104, %p105
      %p107 = scmp.ne.s32.totalorder %s96, %s97
      %p108 = scmp.eq.s32.totalorder %s20, 0
      %p109 = por %p107, %p108
      %p110 = scmp.ne.s32.totalorder %s96, %s97
      %p111 = scmp.eq.s32.totalorder %s21, 1
      %p112 = por %p110, %p111
      %p114 = scmp.ne.s32.totalorder %s97, %s113
      %p115 = scmp.eq.s32.totalorder %s21, 0
      %p116 = por %p114, %p115
      %p117 = scmp.le.s32.totalorder 1, %s15
      %p118 = scmp.lt.s32.totalorder %s15, 3
      %p119 = pnand %p117, %p118
      %p120 = pneg %p119
      // Predicated region
      $region9: #{tpu_custom_call.1} parent=5 // pred_check
        _
      $region10: #{tpu_custom_call.1} parent=5 // pred_check_branch
        %122 = sbr.rel (%p119) target = $region12
      $region11: #{tpu_custom_call.1} parent=5 // pred_region
        %s123 = ssub.s32 %s15, 1
        // Predicated region
        $region13: #{tpu_custom_call.1} parent=11 // pred_check
          %p124 = pneg %p62
        $region14: #{tpu_custom_call.1} parent=11 // pred_check_branch
          %126 = sbr.rel (%p124) target = $region16
        $region15: #{tpu_custom_call.1} parent=11 // pred_region
          _
        $region16: #{tpu_custom_call.1} parent=11 // pred_fallthru
          _
        // Predicated region
        $region17: #{tpu_custom_call.1} parent=11 // pred_check
          %p127 = pneg %p83
        $region18: #{tpu_custom_call.1} parent=11 // pred_check_branch
          %129 = sbr.rel (%p127) target = $region20
        $region19: #{tpu_custom_call.1} parent=11 // pred_region
          _
        $region20: #{tpu_custom_call.1} parent=11 // pred_fallthru
          _
      $region12: #{tpu_custom_call.1} parent=5 // pred_fallthru
        _
      %p130 = scmp.lt.s32.totalorder %s15, 2
      // Predicated region
      $region21: #{tpu_custom_call.1} parent=5 // pred_check
        %p131 = pneg %p130
      $region22: #{tpu_custom_call.1} parent=5 // pred_check_branch
        %133 = sbr.rel (%p131) target = $region24
      $region23: #{tpu_custom_call.1} parent=5 // pred_region
        // Predicated region
        $region25: #{tpu_custom_call.1} parent=23 // pred_check
          %p134 = pneg %p35
        $region26: #{tpu_custom_call.1} parent=23 // pred_check_branch
          %136 = sbr.rel (%p134) target = $region28
        $region27: #{tpu_custom_call.1} parent=23 // pred_region
          %s137 = sand.u32 %s25, 1
          %s138 = scalar_lea.sflag [#allocation4], %s137
          %s139 = sand.u32 %s25, 1
          %s140 = smul.addr %s139, 32
          %s141 = scalar_lea.vmem [#allocation3], %s140
          %s143 = ssub.s32 512, 512
          %144 = vsyncadd %s138, %s143
          %s145 = smul.addr %s15, 4
          %s146 = smul.addr %s145, 128
          %s147 = scalar_lea.hbm %s0, %s146
          %s149 = sshll.u32 %s141, 4
          %s150 = int_to_ptr.vmem [resolvable:$true] %s149
          %152 = dma.hbm_to_vmem [thread:$0]  %s147, 512, %s150, %s138
        $region28: #{tpu_custom_call.1} parent=23 // pred_fallthru
          _
      $region24: #{tpu_custom_call.1} parent=5 // pred_fallthru
        _
      %p153 = scmp.le.s32.totalorder 1, %s15
      %p154 = scmp.lt.s32.totalorder %s15, 3
      %p155 = pnand %p153, %p154
      %p156 = pneg %p155
      // Predicated region
      $region29: #{tpu_custom_call.1} parent=5 // pred_check
        _
      $region30: #{tpu_custom_call.1} parent=5 // pred_check_branch
        %158 = sbr.rel (%p155) target = $region32
      $region31: #{tpu_custom_call.1} parent=5 // pred_region
        %s159 = ssub.s32 %s15, 1
        %s160 = sand.u32 %s28, 1
        %s161 = scalar_lea.sflag [#allocation4], %s160
        %s162 = sand.u32 %s28, 1
        %s163 = smul.addr %s162, 32
        %s164 = scalar_lea.vmem [#allocation3], %s163
        // Predicated region
        $region33: #{tpu_custom_call.1} parent=31 // pred_check
          %p165 = pneg %p41
        $region34: #{tpu_custom_call.1} parent=31 // pred_check_branch
          %167 = sbr.rel (%p165) target = $region36
        $region35: #{tpu_custom_call.1} parent=31 // pred_region
          %168 = dma.done %s161, 512
        $region36: #{tpu_custom_call.1} parent=31 // pred_fallthru
          _
        %s169 = sand.u32 %s28, 1
        %s170 = scalar_lea.sflag [#allocation4], %s169
        %s171 = sand.u32 %s28, 1
        %s172 = smul.addr %s171, 32
        %s173 = scalar_lea.vmem [#allocation3], %s172
        %p174 = pneg %p41
        %p175 = pneg %p38
        %p176 = pneg %p62
        %p177 = pneg %p59
        %p178 = pneg %p83
        %p179 = pneg %p80
        %p180 = pneg %p109
        %p181 = pneg %p106
        %s182 = sand.u32 %s96, 1
        %s183 = scalar_lea.sflag [#allocation5], %s182
        %s184 = sand.u32 %s96, 1
        %s185 = smul.addr %s184, 24
        %s186 = scalar_lea.vmem [#allocation6], %s185
        %v187 = vld [vmem:[%s164] sm:$0xff]
        %v188 = vld [vmem:[%s164 + $0x8] sm:$0xff]
        %v189 = vld [vmem:[%s164 + $0x10] sm:$0xff]
        %v190 = vld [vmem:[%s164 + $0x18] sm:$0xff]
        %191 = vst [vmem:[#allocation2] sm:$0xff] %v187
        %192 = vst [vmem:[#allocation2 + $0x8] sm:$0xff] %v188
        %vm193 = vcmask 523264
        %194 = vst.msk [vmem:[#allocation2 + $0x10] sm:$0xff] %vm193, %v189
        %198 = vrot.lane.b32.xlu0 %v187, 126
        %v199 = vpop.permute.xlu0 %198
        %200 = vrot.lane.b32.xlu0 %v188, 126
        %v201 = vpop.permute.xlu0 %200
        %202 = vrot.lane.b32.xlu0 %v189, 126
        %v203 = vpop.permute.xlu0 %202
        %vm204 = vcmask 1031168
        %v205 = vsel %vm204, %v199, %v201
        %v206 = vsel %vm204, %v201, %v203
        %210 = vst [vmem:[#allocation2 + $0x18] sm:$0xff] %v205
        %211 = vst [vmem:[#allocation2 + $0x20] sm:$0xff] %v206
        %212 = vst.msk [vmem:[#allocation2 + $0x28] sm:$0xff] %vm193, %v203
        %213 = vrot.lane.b32.xlu0 %v187, 124
        %v214 = vpop.permute.xlu0 %213
        %215 = vrot.lane.b32.xlu0 %v188, 124
        %v216 = vpop.permute.xlu0 %215
        %217 = vrot.lane.b32.xlu0 %v189, 124
        %v218 = vpop.permute.xlu0 %217
        %vm219 = vcmask 1014784
        %v220 = vsel %vm219, %v214, %v216
        %v221 = vsel %vm219, %v216, %v218
        %225 = vst [vmem:[#allocation2 + $0x30] sm:$0xff] %v220
        %226 = vst [vmem:[#allocation2 + $0x38] sm:$0xff] %v221
        %227 = vst.msk [vmem:[#allocation2 + $0x40] sm:$0xff] %vm193, %v218
        %228 = vrot.lane.b32.xlu0 %v187, 88
        %v229 = vpop.permute.xlu0 %228
        %230 = vrot.lane.b32.xlu0 %v188, 88
        %v231 = vpop.permute.xlu0 %230
        %232 = vrot.lane.b32.xlu0 %v189, 88
        %v233 = vpop.permute.xlu0 %232
        %vm234 = vcmask 719872
        %v235 = vsel %vm234, %v229, %v231
        %v236 = vsel %vm234, %v231, %v233
        %240 = vst [vmem:[#allocation2 + $0x48] sm:$0xff] %v235
        %241 = vst [vmem:[#allocation2 + $0x50] sm:$0xff] %v236
        %242 = vst.msk [vmem:[#allocation2 + $0x58] sm:$0xff] %vm193, %v233
        %243 = vrot.lane.b32.xlu0 %v187, 86
        %v244 = vpop.permute.xlu0 %243
        %245 = vrot.lane.b32.xlu0 %v188, 86
        %v246 = vpop.permute.xlu0 %245
        %247 = vrot.lane.b32.xlu0 %v189, 86
        %v248 = vpop.permute.xlu0 %247
        %vm249 = vcmask 703488
        %v250 = vsel %vm249, %v244, %v246
        %v251 = vsel %vm249, %v246, %v248
        %255 = vst [vmem:[#allocation2 + $0x60] sm:$0xff] %v250
        %256 = vst [vmem:[#allocation2 + $0x68] sm:$0xff] %v251
        %257 = vst.msk [vmem:[#allocation2 + $0x70] sm:$0xff] %vm193, %v248
        %258 = vrot.lane.b32.xlu0 %v187, 84
        %v259 = vpop.permute.xlu0 %258
        %260 = vrot.lane.b32.xlu0 %v188, 84
        %v261 = vpop.permute.xlu0 %260
        %262 = vrot.lane.b32.xlu0 %v189, 84
        %v263 = vpop.permute.xlu0 %262
        %vm264 = vcmask 687104
        %v265 = vsel %vm264, %v259, %v261
        %v266 = vsel %vm264, %v261, %v263
        %270 = vst [vmem:[#allocation2 + $0x78] sm:$0xff] %v265
        %271 = vst [vmem:[#allocation2 + $0x80] sm:$0xff] %v266
        %272 = vst.msk [vmem:[#allocation2 + $0x88] sm:$0xff] %vm193, %v263
        %274 = vrot.lane.b32.xlu0 %v187, 48
        %v275 = vpop.permute.xlu0 %274
        %276 = vrot.lane.b32.xlu0 %v188, 48
        %v277 = vpop.permute.xlu0 %276
        %278 = vrot.lane.b32.xlu0 %v189, 48
        %v279 = vpop.permute.xlu0 %278
        %280 = vrot.lane.b32.xlu0 %v190, 48
        %v281 = vpop.permute.xlu0 %280
        %vm282 = vcmask 392192
        %v283 = vsel %vm282, %v275, %v277
        %v284 = vsel %vm282, %v277, %v279
        %v285 = vsel %vm282, %v279, %v281
        %289 = vst [vmem:[#allocation2 + $0x90] sm:$0xff] %v283
        %290 = vst [vmem:[#allocation2 + $0x98] sm:$0xff] %v284
        %291 = vst.msk [vmem:[#allocation2 + $0xa0] sm:$0xff] %vm193, %v285
        %292 = vrot.lane.b32.xlu0 %v187, 46
        %v293 = vpop.permute.xlu0 %292
        %294 = vrot.lane.b32.xlu0 %v188, 46
        %v295 = vpop.permute.xlu0 %294
        %296 = vrot.lane.b32.xlu0 %v189, 46
        %v297 = vpop.permute.xlu0 %296
        %298 = vrot.lane.b32.xlu0 %v190, 46
        %v299 = vpop.permute.xlu0 %298
        %vm300 = vcmask 375808
        %v301 = vsel %vm300, %v293, %v295
        %v302 = vsel %vm300, %v295, %v297
        %v303 = vsel %vm300, %v297, %v299
        %307 = vst [vmem:[#allocation2 + $0xa8] sm:$0xff] %v301
        %308 = vst [vmem:[#allocation2 + $0xb0] sm:$0xff] %v302
        %309 = vst.msk [vmem:[#allocation2 + $0xb8] sm:$0xff] %vm193, %v303
        %310 = vrot.lane.b32.xlu0 %v187, 44
        %v311 = vpop.permute.xlu0 %310
        %312 = vrot.lane.b32.xlu0 %v188, 44
        %v313 = vpop.permute.xlu0 %312
        %314 = vrot.lane.b32.xlu0 %v189, 44
        %v315 = vpop.permute.xlu0 %314
        %316 = vrot.lane.b32.xlu0 %v190, 44
        %v317 = vpop.permute.xlu0 %316
        %vm318 = vcmask 359424
        %v319 = vsel %vm318, %v311, %v313
        %v320 = vsel %vm318, %v313, %v315
        %v321 = vsel %vm318, %v315, %v317
        %325 = vst [vmem:[#allocation2 + $0xc0] sm:$0xff] %v319
        %326 = vst [vmem:[#allocation2 + $0xc8] sm:$0xff] %v320
        %327 = vst.msk [vmem:[#allocation2 + $0xd0] sm:$0xff] %vm193, %v321
        %v328 = vld [vmem:[%s1] sm:$0xff]
        %v329 = vld [vmem:[#allocation2] sm:$0xff]
        %v330 = vld [vmem:[#allocation2 + $0x8] sm:$0xff]
        %v331 = vld [vmem:[#allocation2 + $0x10] sm:$0xff]
        %v332 = vld [vmem:[#allocation2 + $0x18] sm:$0xff]
        %v333 = vld [vmem:[#allocation2 + $0x20] sm:$0xff]
        %v334 = vld [vmem:[#allocation2 + $0x28] sm:$0xff]
        %v335 = vld [vmem:[#allocation2 + $0x30] sm:$0xff]
        %v336 = vld [vmem:[#allocation2 + $0x38] sm:$0xff]
        %v337 = vld [vmem:[#allocation2 + $0x40] sm:$0xff]
        %v338 = vld [vmem:[#allocation2 + $0x48] sm:$0xff]
        %v339 = vld [vmem:[#allocation2 + $0x50] sm:$0xff]
        %v340 = vld [vmem:[#allocation2 + $0x58] sm:$0xff]
        %v341 = vld [vmem:[#allocation2 + $0x60] sm:$0xff]
        %v342 = vld [vmem:[#allocation2 + $0x68] sm:$0xff]
        %v343 = vld [vmem:[#allocation2 + $0x70] sm:$0xff]
        %v344 = vld [vmem:[#allocation2 + $0x78] sm:$0xff]
        %v345 = vld [vmem:[#allocation2 + $0x80] sm:$0xff]
        %v346 = vld [vmem:[#allocation2 + $0x88] sm:$0xff]
        %v347 = vld [vmem:[#allocation2 + $0x90] sm:$0xff]
        %v348 = vld [vmem:[#allocation2 + $0x98] sm:$0xff]
        %v349 = vld [vmem:[#allocation2 + $0xa0] sm:$0xff]
        %v350 = vld [vmem:[#allocation2 + $0xa8] sm:$0xff]
        %v351 = vld [vmem:[#allocation2 + $0xb0] sm:$0xff]
        %v352 = vld [vmem:[#allocation2 + $0xb8] sm:$0xff]
        %v353 = vld [vmem:[#allocation2 + $0xc0] sm:$0xff]
        %v354 = vld [vmem:[#allocation2 + $0xc8] sm:$0xff]
        %v355 = vld [vmem:[#allocation2 + $0xd0] sm:$0xff]
        %v356 = vld [vmem:[%s2] sm:$0xff]
        %358 = vset.pattern.permute.xlu0 0
        %359 = vperm.xlu0 %358, %v356
        %v360 = vpop.permute.xlu0 %359
        %vm362 = vcmask 588800
        %v364 = vsel %vm362, %v328, 0
        %366 = vmatprep.subr.mxu0 0.0
        %367 = vmatpush1.msra.mxu0 0.0
        %368 = vmatprep.subr.mxu0 0.0
        %369 = vmatpush1.msra.mxu0 0.0
        %370 = vmatprep.subr.mxu0 0.0
        %371 = vmatpush1.msra.mxu0 0.0
        %372 = vmatprep.subr.mxu0 0.0
        %373 = vmatpush1.msra.mxu0 0.0
        %374 = vmatprep.subr.mxu0 0.0
        %375 = vmatpush1.msra.mxu0 0.0
        %376 = vmatprep.subr.mxu0 0.0
        %377 = vmatpush1.msra.mxu0 0.0
        %378 = vmatprep.subr.mxu0 0.0
        %379 = vmatpush1.msra.mxu0 0.0
        %380 = vmatprep.subr.mxu0 %v354
        %381 = vmatpush1.msra.mxu0 %v353
        %382 = vmatprep.subr.mxu0 %v351
        %383 = vmatpush1.msra.mxu0 %v350
        %384 = vmatprep.subr.mxu0 %v348
        %385 = vmatpush1.msra.mxu0 %v347
        %386 = vmatprep.subr.mxu0 %v345
        %387 = vmatpush1.msra.mxu0 %v344
        %388 = vmatprep.subr.mxu0 %v342
        %389 = vmatpush1.msra.mxu0 %v341
        %390 = vmatprep.subr.mxu0 %v339
        %391 = vmatpush1.msra.mxu0 %v338
        %392 = vmatprep.subr.mxu0 %v336
        %393 = vmatpush1.msra.mxu0 %v335
        %394 = vmatprep.subr.mxu0 %v333
        %395 = vmatpush1.msra.mxu0 %v332
        %396 = vmatprep.subr.mxu0 %v330
        %397 = vmatpush1.msra.mxu0 %v329
        %398 = vmatprep.subr.mxu0 0.0
        %399 = vmatpush2.msra.mxu0 0.0
        %400 = vmatprep.subr.mxu0 0.0
        %401 = vmatpush2.msra.mxu0 0.0
        %402 = vmatprep.subr.mxu0 0.0
        %403 = vmatpush2.msra.mxu0 0.0
        %404 = vmatprep.subr.mxu0 0.0
        %405 = vmatpush2.msra.mxu0 0.0
        %406 = vmatprep.subr.mxu0 0.0
        %407 = vmatpush2.msra.mxu0 0.0
        %408 = vmatprep.subr.mxu0 0.0
        %409 = vmatpush2.msra.mxu0 0.0
        %410 = vmatprep.subr.mxu0 0.0
        %411 = vmatpush2.msra.mxu0 0.0
        %412 = vmatprep.subr.mxu0 0.0
        %413 = vmatpush2.msra.mxu0 0.0
        %414 = vmatprep.subr.mxu0 0.0
        %415 = vmatpush2.msra.mxu0 0.0
        %416 = vmatprep.subr.mxu0 0.0
        %417 = vmatpush2.msra.mxu0 0.0
        %418 = vmatprep.subr.mxu0 0.0
        %419 = vmatpush2.msra.mxu0 0.0
        %420 = vmatprep.subr.mxu0 0.0
        %421 = vmatpush2.msra.mxu0 0.0
        %422 = vmatprep.subr.mxu0 0.0
        %423 = vmatpush2.msra.mxu0 0.0
        %424 = vmatprep.subr.mxu0 0.0
        %425 = vmatpush2.msra.mxu0 0.0
        %426 = vmatprep.subr.mxu0 0.0
        %427 = vmatpush2.msra.mxu0 0.0
        %428 = vmatprep.subr.mxu0 0.0
        %429 = vmatpush2.msra.mxu0 0.0
        %430 = vmatprep.mubr.f32.mxu0 0.0
        %431 = vmatmul.mubr.f32.gmra.mxu0 %v364
        %v432 = vpop.f32.mrf.mxu0
        %v433 = vadd.f32 %v360, %v432
        %v434 = vpop.f32.mrf.mxu0
        %v435 = vadd.f32 %v360, %v434
        %436 = vdwg.mxu0
        %437 = vmatprep.subr.mxu0 0.0
        %438 = vmatpush1.msra.mxu0 0.0
        %439 = vmatprep.subr.mxu0 0.0
        %440 = vmatpush1.msra.mxu0 0.0
        %441 = vmatprep.subr.mxu0 0.0
        %442 = vmatpush1.msra.mxu0 0.0
        %443 = vmatprep.subr.mxu0 0.0
        %444 = vmatpush1.msra.mxu0 0.0
        %445 = vmatprep.subr.mxu0 0.0
        %446 = vmatpush1.msra.mxu0 0.0
        %447 = vmatprep.subr.mxu0 0.0
        %448 = vmatpush1.msra.mxu0 0.0
        %449 = vmatprep.subr.mxu0 0.0
        %450 = vmatpush1.msra.mxu0 0.0
        %451 = vmatprep.subr.mxu0 0.0
        %452 = vmatpush1.msra.mxu0 %v355
        %453 = vmatprep.subr.mxu0 0.0
        %454 = vmatpush1.msra.mxu0 %v352
        %455 = vmatprep.subr.mxu0 0.0
        %456 = vmatpush1.msra.mxu0 %v349
        %457 = vmatprep.subr.mxu0 0.0
        %458 = vmatpush1.msra.mxu0 %v346
        %459 = vmatprep.subr.mxu0 0.0
        %460 = vmatpush1.msra.mxu0 %v343
        %461 = vmatprep.subr.mxu0 0.0
        %462 = vmatpush1.msra.mxu0 %v340
        %463 = vmatprep.subr.mxu0 0.0
        %464 = vmatpush1.msra.mxu0 %v337
        %465 = vmatprep.subr.mxu0 0.0
        %466 = vmatpush1.msra.mxu0 %v334
        %467 = vmatprep.subr.mxu0 0.0
        %468 = vmatpush1.msra.mxu0 %v331
        %469 = vmatprep.subr.mxu0 0.0
        %470 = vmatpush2.msra.mxu0 0.0
        %471 = vmatprep.subr.mxu0 0.0
        %472 = vmatpush2.msra.mxu0 0.0
        %473 = vmatprep.subr.mxu0 0.0
        %474 = vmatpush2.msra.mxu0 0.0
        %475 = vmatprep.subr.mxu0 0.0
        %476 = vmatpush2.msra.mxu0 0.0
        %477 = vmatprep.subr.mxu0 0.0
        %478 = vmatpush2.msra.mxu0 0.0
        %479 = vmatprep.subr.mxu0 0.0
        %480 = vmatpush2.msra.mxu0 0.0
        %481 = vmatprep.subr.mxu0 0.0
        %482 = vmatpush2.msra.mxu0 0.0
        %483 = vmatprep.subr.mxu0 0.0
        %484 = vmatpush2.msra.mxu0 0.0
        %485 = vmatprep.subr.mxu0 0.0
        %486 = vmatpush2.msra.mxu0 0.0
        %487 = vmatprep.subr.mxu0 0.0
        %488 = vmatpush2.msra.mxu0 0.0
        %489 = vmatprep.subr.mxu0 0.0
        %490 = vmatpush2.msra.mxu0 0.0
        %491 = vmatprep.subr.mxu0 0.0
        %492 = vmatpush2.msra.mxu0 0.0
        %493 = vmatprep.subr.mxu0 0.0
        %494 = vmatpush2.msra.mxu0 0.0
        %495 = vmatprep.subr.mxu0 0.0
        %496 = vmatpush2.msra.mxu0 0.0
        %497 = vmatprep.subr.mxu0 0.0
        %498 = vmatpush2.msra.mxu0 0.0
        %499 = vmatprep.subr.mxu0 0.0
        %500 = vmatpush2.msra.mxu0 0.0
        %501 = vmatprep.mubr.f32.mxu0 0.0
        %502 = vmatmul.mubr.f32.gmra.mxu0 %v364
        %v503 = vpop.f32.mrf.mxu0
        %v504 = vadd.f32 %v360, %v503
        %v505 = vpop.f32.mrf.mxu0
        %506 = vdwg.mxu0
        %507 = vst [vmem:[%s186] sm:$0xff] %v433
        %508 = vst [vmem:[%s186 + $0x8] sm:$0xff] %v435
        %509 = vst.msk [vmem:[%s186 + $0x10] sm:$0xff] %vm193, %v504
        %s510 = sand.u32 %s96, 1
        %s511 = scalar_lea.sflag [#allocation5], %s510
        %s512 = sand.u32 %s96, 1
        %s513 = smul.addr %s512, 24
        %s514 = scalar_lea.vmem [#allocation6], %s513
        // Predicated region
        $region37: #{tpu_custom_call.1} parent=31 // pred_check
          %p515 = pneg %p106
        $region38: #{tpu_custom_call.1} parent=31 // pred_check_branch
          %517 = sbr.rel (%p515) target = $region40
        $region39: #{tpu_custom_call.1} parent=31 // pred_region
          %s519 = ssub.s32 384, 384
          %520 = vsyncadd %s511, %s519
          %s521 = smul.addr %s20, 3
          %s522 = smul.addr %s521, 128
          %s523 = scalar_lea.hbm %s3, %s522
          %s525 = sshll.u32 %s514, 4
          %s526 = int_to_ptr.vmem [resolvable:$true] %s525
          %528 = dma.vmem_to_hbm [thread:$0]  %s526, 384, %s523, %s511
        $region40: #{tpu_custom_call.1} parent=31 // pred_fallthru
          _
      $region32: #{tpu_custom_call.1} parent=5 // pred_fallthru
        _
      %p529 = scmp.le.s32.totalorder 2, %s15
      // Predicated region
      $region41: #{tpu_custom_call.1} parent=5 // pred_check
        %p530 = pneg %p529
      $region42: #{tpu_custom_call.1} parent=5 // pred_check_branch
        %532 = sbr.rel (%p530) target = $region44
      $region43: #{tpu_custom_call.1} parent=5 // pred_region
        %s533 = ssub.s32 %s15, 2
        // Predicated region
        $region45: #{tpu_custom_call.1} parent=43 // pred_check
          %p534 = pneg %p112
        $region46: #{tpu_custom_call.1} parent=43 // pred_check_branch
          %536 = sbr.rel (%p534) target = $region48
        $region47: #{tpu_custom_call.1} parent=43 // pred_region
          %s537 = sand.u32 %s97, 1
          %s538 = scalar_lea.sflag [#allocation5], %s537
          %s539 = sand.u32 %s97, 1
          %s540 = smul.addr %s539, 24
          %s541 = scalar_lea.vmem [#allocation6], %s540
          %542 = dma.done %s538, 384
        $region48: #{tpu_custom_call.1} parent=43 // pred_fallthru
          _
      $region44: #{tpu_custom_call.1} parent=5 // pred_fallthru
        _
    $region6: #{tpu_custom_call.1} parent=1 // loop_footer
      %s19 = sadd.s32 1, %s15
    $region7: #{tpu_custom_call.1} parent=1 // loop_footer_branch
      %14 = sbr.rel target = $region3
    $region8: #{tpu_custom_call.1} parent=1 // loop_exit
      _
    %543 = vsyncpa [#allocation4], 1
    %s544 = scalar_lea.sflag [#allocation4], 1
    %545 = vsyncpa %s544, 1
    %546 = vsyncpa [#allocation5], 1
    %s547 = scalar_lea.sflag [#allocation5], 1
    %548 = vsyncpa %s547, 1

</llo_original>
